<compile_context>
chip_gen: v7x
topology: tpu7x:2x2x1
jax: 0.10.0
libtpu: 0.0.40
codegen_flags: <defaults>
</compile_context>

<pallas_src>
import functools

import jax
import jax.numpy as jnp
from jax.experimental import pallas as pl
from jax.experimental.pallas import tpu as pltpu

_EPS = 1e-5
_MIN_STEPS = 8  # >= 4 grid steps per TensorCore on v7x (2 TCs/chip)


def _round_up(a, b):
    return ((a + b - 1) // b) * b


def _ln_biasfree_kernel(x_ref, w_ref, o_ref, *, eps):
    # x_ref: (1, C, T)   w_ref: (1, C, 1)   o_ref: (1, C, T)
    x = x_ref[...].astype(jnp.float32)
    inv_c = 1.0 / x.shape[1]
    mu = jnp.sum(x, axis=1, keepdims=True) * inv_c           # (1, 1, T)
    d = x - mu
    var = jnp.sum(d * d, axis=1, keepdims=True) * inv_c      # two-pass, unbiased=False
    inv = jax.lax.rsqrt(var + eps)
    w = w_ref[...].astype(jnp.float32)                       # broadcasts over lanes
    o_ref[...] = (x * inv * w).astype(o_ref.dtype)


def _ln_withbias_kernel(x_ref, w_ref, b_ref, o_ref, *, eps):
    x = x_ref[...].astype(jnp.float32)
    inv_c = 1.0 / x.shape[1]
    mu = jnp.sum(x, axis=1, keepdims=True) * inv_c
    d = x - mu
    var = jnp.sum(d * d, axis=1, keepdims=True) * inv_c
    inv = jax.lax.rsqrt(var + eps)
    w = w_ref[...].astype(jnp.float32)
    b = b_ref[...].astype(jnp.float32)
    o_ref[...] = (d * inv * w + b).astype(o_ref.dtype)


def _pick_spatial_tile(C, HW, B, itemsize):
    """Pick the lane (spatial) tile: ~2 MiB x-slab, capped, >= _MIN_STEPS grid steps."""
    # Physical VMEM footprint uses the sublane-padded channel count.
    sublane = 8 if itemsize >= 4 else (16 if itemsize == 2 else 32)
    c_pad = _round_up(C, sublane)
    # Target ~2 MiB per x block; 512-2048 lane tiles already reach ~85-86% of
    # the HBM roofline, so cap at 4096 lanes rather than filling VMEM.
    target_bytes = 2 << 20
    tile = target_bytes // max(c_pad * itemsize, 1)
    tile = max(512, min(tile, 4096))
    tile = max(128, (tile // 128) * 128)
    if tile >= HW:
        tile = HW  # full-extent last dim is always legal
    # Enforce enough total grid steps for DMA/compute overlap and megacore
    # balance; splitting is only legal in multiples of 128 lanes.
    if HW >= 128 and B * pl.cdiv(HW, tile) < _MIN_STEPS:
        want_tiles = pl.cdiv(_MIN_STEPS, B)
        t2 = max(128, _round_up(pl.cdiv(HW, want_tiles), 128))
        tile = max(128, min(tile, t2))
    if tile > HW:
        tile = HW  # HW < 128: the only legal block is the full spatial extent
    return tile


def _vmem_limit_bytes():
    try:
        cap = int(pltpu.get_tpu_info().vmem_capacity_bytes)
    except Exception:
        cap = 64 << 20
    # Per-TC capacity: 64 MiB on v7x, 128 MiB on v5e/v6e.  Clamp defensively in
    # case the query reports a per-chip number.
    cap = min(cap, 128 << 20)
    return (48 << 20) if cap <= (64 << 20) else (64 << 20)


def layernorm(x, weight, bias=None, *, eps=_EPS):
    """Restormer LayerNorm forward.

    x: (B, C, H, W); weight: (C,); bias: (C,) or None (BiasFree).
    Normalizes over the channel axis C (equivalent to to_3d -> LN -> to_4d).
    """
    B, C, H, W = x.shape
    HW = H * W
    x3 = x.reshape(B, C, HW)
    tile = _pick_spatial_tile(C, HW, B, x.dtype.itemsize)
    grid = (B, pl.cdiv(HW, tile))

    x_spec = pl.BlockSpec((1, C, tile), lambda b, t: (b, 0, t))
    p_spec = pl.BlockSpec((1, C, 1), lambda b, t: (0, 0, 0))

    in_specs = [x_spec, p_spec]
    args = [x3, weight.reshape(1, C, 1)]
    if bias is None:
        kernel = functools.partial(_ln_biasfree_kernel, eps=eps)
    else:
        kernel = functools.partial(_ln_withbias_kernel, eps=eps)
        in_specs.append(p_spec)
        args.append(bias.reshape(1, C, 1))

    nelem = B * C * HW
    cost = pl.CostEstimate(
        flops=7 * nelem,
        transcendentals=B * HW,
        bytes_accessed=2 * nelem * x.dtype.itemsize + 2 * C * 4,
    )

    out3 = pl.pallas_call(
        kernel,
        out_shape=jax.ShapeDtypeStruct((B, C, HW), x.dtype),
        grid_spec=pltpu.PrefetchScalarGridSpec(
            num_scalar_prefetch=0,
            grid=grid,
            in_specs=in_specs,
            out_specs=pl.BlockSpec((1, C, tile), lambda b, t: (b, 0, t)),
        ),
        compiler_params=pltpu.CompilerParams(
            dimension_semantics=("parallel", "parallel"),
            vmem_limit_bytes=_vmem_limit_bytes(),
        ),
        cost_estimate=cost,
    )(*args)
    return out3.reshape(B, C, H, W)


class LayerNorm:
    """Mirrors the PyTorch LayerNorm(dim, LayerNorm_type) module."""

    def __init__(self, dim, LayerNorm_type):
        self.weight = jnp.ones((dim,), jnp.float32)
        self.bias = None if LayerNorm_type == "BiasFree" else jnp.zeros(
            (dim,), jnp.float32)

    def __call__(self, x):
        return layernorm(x, self.weight, self.bias)


if __name__ == "__main__":
    key = jax.random.PRNGKey(0)
    B, C, H, W = 2, 4, 16, 16
    x = jax.random.normal(key, (B, C, H, W), dtype=jnp.float32)

    # Plain-JAX reference (same math as to_3d -> LN -> to_4d).
    xt = jnp.transpose(x.reshape(B, C, H * W), (0, 2, 1))       # (B, HW, C)
    mu = jnp.mean(xt, axis=-1, keepdims=True)
    var = jnp.mean((xt - mu) ** 2, axis=-1, keepdims=True)

    # --- BiasFree (weight init = ones, as in the module) ---
    ln_bf = LayerNorm(C, "BiasFree")
    out_bf = jax.block_until_ready(ln_bf(x))
    ref_bf = xt / jnp.sqrt(var + _EPS) * ln_bf.weight
    ref_bf = jnp.transpose(ref_bf, (0, 2, 1)).reshape(B, C, H, W)
    assert jnp.allclose(out_bf, ref_bf, atol=1e-5, rtol=1e-5), "BiasFree mismatch"

    # --- WithBias (random affine params for a stronger check) ---
    kw, kb = jax.random.split(jax.random.PRNGKey(1))
    w2 = jax.random.normal(kw, (C,), jnp.float32)
    b2 = jax.random.normal(kb, (C,), jnp.float32)
    out_wb = jax.block_until_ready(layernorm(x, w2, b2))
    ref_wb = (xt - mu) / jnp.sqrt(var + _EPS) * w2 + b2
    ref_wb = jnp.transpose(ref_wb, (0, 2, 1)).reshape(B, C, H, W)
    assert jnp.allclose(out_wb, ref_wb, atol=1e-5, rtol=1e-5), "WithBias mismatch"

    print("KERNEL_OK")
</pallas_src>

<mosaic_0001>
module attributes {stable_mosaic.version = 11 : i64} {
  func.func @_ln_biasfree_kernel(%arg0: i32, %arg1: i32, %arg2: memref<1x4x128xf32, #tpu.memory_space<vmem>>, %arg3: memref<1x4x1xf32, #tpu.memory_space<vmem>>, %arg4: memref<1x4x128xf32, #tpu.memory_space<vmem>>) attributes {dimension_semantics = [#tpu.dimension_semantics<parallel>, #tpu.dimension_semantics<parallel>], iteration_bounds = array<i64: 2, 2>, scalar_prefetch = 0 : i64, scratch_operands = 0 : i64, tpu.core_type = #tpu.core_type<tc>, window_params = [{transform_indices = @transform_0, window_bounds = array<i64: 1, 4, 128>}, {pipeline_mode = #tpu.pipeline_mode<synchronous>, transform_indices = @transform_1, window_bounds = array<i64: 1, 4, 1>}, {transform_indices = @transform_2, window_bounds = array<i64: 1, 4, 128>}]} {
    %c0 = arith.constant 0 : index
    %c0_0 = arith.constant 0 : index
    %c0_1 = arith.constant 0 : index
    %0 = vector.load %arg2[%c0, %c0_0, %c0_1] : memref<1x4x128xf32, #tpu.memory_space<vmem>>, vector<1x4x128xf32>
    %cst = arith.constant dense<0.000000e+00> : vector<1x128xf32>
    %1 = vector.multi_reduction <add>, %0, %cst [1] : vector<1x4x128xf32> to vector<1x128xf32>
    %2 = vector.shape_cast %1 : vector<1x128xf32> to vector<1x1x128xf32>
    %cst_2 = arith.constant 2.500000e-01 : f32
    %3 = vector.broadcast %cst_2 : f32 to vector<1x1x128xf32>
    %4 = arith.mulf %2, %3 : vector<1x1x128xf32>
    %5 = vector.broadcast %4 : vector<1x1x128xf32> to vector<1x4x128xf32>
    %6 = arith.subf %0, %5 : vector<1x4x128xf32>
    %7 = arith.mulf %6, %6 : vector<1x4x128xf32>
    %cst_3 = arith.constant dense<0.000000e+00> : vector<1x128xf32>
    %8 = vector.multi_reduction <add>, %7, %cst_3 [1] : vector<1x4x128xf32> to vector<1x128xf32>
    %9 = vector.shape_cast %8 : vector<1x128xf32> to vector<1x1x128xf32>
    %cst_4 = arith.constant 2.500000e-01 : f32
    %10 = vector.broadcast %cst_4 : f32 to vector<1x1x128xf32>
    %11 = arith.mulf %9, %10 : vector<1x1x128xf32>
    %cst_5 = arith.constant 9.99999974E-6 : f32
    %12 = vector.broadcast %cst_5 : f32 to vector<1x1x128xf32>
    %13 = arith.addf %11, %12 : vector<1x1x128xf32>
    %14 = math.rsqrt %13 : vector<1x1x128xf32>
    %c0_6 = arith.constant 0 : index
    %c0_7 = arith.constant 0 : index
    %c0_8 = arith.constant 0 : index
    %15 = vector.load %arg3[%c0_6, %c0_7, %c0_8] : memref<1x4x1xf32, #tpu.memory_space<vmem>>, vector<1x4x1xf32>
    %16 = vector.broadcast %14 : vector<1x1x128xf32> to vector<1x4x128xf32>
    %17 = arith.mulf %0, %16 : vector<1x4x128xf32>
    %18 = vector.broadcast %15 : vector<1x4x1xf32> to vector<1x4x128xf32>
    %19 = arith.mulf %17, %18 : vector<1x4x128xf32>
    %c0_9 = arith.constant 0 : index
    %c0_10 = arith.constant 0 : index
    %c0_11 = arith.constant 0 : index
    %20 = vector.load %arg4[%c0_9, %c0_10, %c0_11] : memref<1x4x128xf32, #tpu.memory_space<vmem>>, vector<1x4x128xf32>
    tpu.vector_store %arg4[%c0_9, %c0_10, %c0_11], %19 {strides = array<i32>} : memref<1x4x128xf32, #tpu.memory_space<vmem>>, vector<1x4x128xf32>,
    return
  }
  func.func @transform_0(%arg0: i32, %arg1: i32) -> (i32, i32, i32) {
    %c0_i32 = arith.constant 0 : i32
    %c0_i32_0 = arith.constant 0 : i32
    return %arg0, %c0_i32, %arg1 : i32, i32, i32
  }
  func.func @transform_1(%arg0: i32, %arg1: i32) -> (i32, i32, i32) {
    %c0_i32 = arith.constant 0 : i32
    %c0_i32_0 = arith.constant 0 : i32
    %c0_i32_1 = arith.constant 0 : i32
    %c0_i32_2 = arith.constant 0 : i32
    return %c0_i32, %c0_i32_0, %c0_i32_1 : i32, i32, i32
  }
  func.func @transform_2(%arg0: i32, %arg1: i32) -> (i32, i32, i32) {
    %c0_i32 = arith.constant 0 : i32
    %c0_i32_0 = arith.constant 0 : i32
    return %arg0, %c0_i32, %arg1 : i32, i32, i32
  }
}

</mosaic_0001>

<llo_original>
// kernel: tpu_custom_call.1
$region0: #{tpu_custom_call.1}
  #allocation0 [shape = 'u32[]', space=smem, size = 0x4, offset = 0x4, fixed_abs, tag = 'smem constant byte address 0x4 - core index']
  #allocation1 [shape = 'u32[144,128]{1,0:T(1,128)}', space=vmem, size = 0x12000, scoped, tag = 'internal scratch']
  %s0 = inlined_call_operand.hbm [shape: f32[2,4,256], index: 0, kind: input, shape index: {}]
  %s1 = inlined_call_operand.vmem [shape: f32[1,4,1], index: 1, kind: input, shape index: {}]
  %s2 = inlined_call_operand.hbm [shape: f32[2,4,256], index: 2, kind: output, shape index: {}]
  %s3 = sld [smem:[#allocation0]]
  $region45: #{tpu_custom_call.1} parent=0
    _
  %s5 = ssub.s32 1, %s3
  %s6 = scalar_select 0, %s5, %s3
  $region1: #{tpu_custom_call.1} parent=0
    #allocation2 [shape = 'u8[4096]{0}', space=vmem, size = 0x1000, scoped, tag = 'input window, operand 0']
    #allocation3 [shape = 's32[2]{0}', space=sflag, size = 0x8, scoped, tag = 'scoped memory for tpu_custom_call.1']
    #allocation4 [shape = 's32[2]{0}', space=sflag, size = 0x8, scoped, tag = 'scoped memory for tpu_custom_call.1']
    #allocation5 [shape = 'u8[4096]{0}', space=vmem, size = 0x1000, scoped, tag = 'output window, operand 0']
    %7 = vsyncpa [#allocation3], 0
    %s8 = scalar_lea.sflag [#allocation3], 1
    %9 = vsyncpa %s8, 0
    %10 = vsyncpa [#allocation4], 0
    %s11 = scalar_lea.sflag [#allocation4], 1
    %12 = vsyncpa %s11, 0
    loop: start=0, step=1, limit=6
    $region2: #{tpu_custom_call.1} parent=1 // loop_pre_header
      _
    $region3: #{tpu_custom_call.1} parent=1 // loop_header
      %s14 = sphi 0, %s18
      %p15 = scmp.ge.s32.totalorder %s14, 6
      %s21 = sphi 0, %s33
      %s22 = sphi 0, %s29
      %s23 = sphi 0, %s21
      %s24 = sphi 0, %s22
      %s25 = sphi 0, %s23
      %s26 = sphi 0, %s24
      %s38 = sphi 0, %s40
      %s41 = sphi 0, %s38
      %s42 = sphi 0, %s41
      %s58 = sphi 0, %s42
      %s62 = sphi 0, %s62
      %s64 = sphi 0, %s62
      %s65 = sphi 0, %s64
      %s79 = sphi 0, %s65
      %s87 = sphi 0, %s89
      %s90 = sphi 0, %s87
      %s91 = sphi 0, %s90
      %s107 = sphi 0, %s91
    $region4: #{tpu_custom_call.1} parent=1 // loop_header_branch
      %17 = sbr.rel (%p15) target = $region8
    $region5: #{tpu_custom_call.1} parent=1 // loop_body
      %s19 = ssub.s32 %s14, 1
      %s20 = ssub.s32 %s14, 2
      %s27 = sadd.s32 1, %s22
      %p28 = scmp.ge.s32.totalorder %s27, 2
      %s29 = scalar_select %p28, 0, %s27
      %s30 = sadd.s32 1, %s21
      %s31 = scalar_select %p28, %s30, %s21
      %p32 = scmp.ge.s32.totalorder %s31, 2
      %s33 = scalar_select %p32, 0, %s31
      %s34 = ssub.s32 %s21, %s33
      %s35 = ssub.s32 %s22, %s29
      %s36 = sor.u32 %s34, %s35
      %p37 = scmp.eq.s32.totalorder %s36, 0
      %s39 = sadd.s32 %s38, 1
      %s40 = scalar_select %p37, %s38, %s39
      %p43 = pneg %p37
      %p44 = scmp.eq.s32.totalorder %s14, 3
      %p45 = por %p43, %p44
      %p46 = scmp.ne.s32.totalorder %s38, %s41
      %p47 = scmp.eq.s32.totalorder %s14, 0
      %p48 = por %p46, %p47
      %p49 = scmp.ne.s32.totalorder %s38, %s41
      %p50 = scmp.eq.s32.totalorder %s19, 3
      %p51 = por %p49, %p50
      %p52 = scmp.ne.s32.totalorder %s41, %s42
      %p53 = scmp.eq.s32.totalorder %s19, 0
      %p54 = por %p52, %p53
      %p55 = scmp.ne.s32.totalorder %s41, %s42
      %p56 = scmp.eq.s32.totalorder %s20, 3
      %p57 = por %p55, %p56
      %p59 = scmp.ne.s32.totalorder %s42, %s58
      %p60 = scmp.eq.s32.totalorder %s20, 0
      %p61 = por %p59, %p60
      %s63 = sadd.s32 %s62, 1
      %p66 = scmp.eq.s32.totalorder %s14, 3
      %p67 = scmp.ne.s32.totalorder %s62, %s64
      %p68 = scmp.eq.s32.totalorder %s14, 0
      %p69 = por %p67, %p68
      %p70 = scmp.ne.s32.totalorder %s62, %s64
      %p71 = scmp.eq.s32.totalorder %s19, 3
      %p72 = por %p70, %p71
      %p73 = scmp.ne.s32.totalorder %s64, %s65
      %p74 = scmp.eq.s32.totalorder %s19, 0
      %p75 = por %p73, %p74
      %p76 = scmp.ne.s32.totalorder %s64, %s65
      %p77 = scmp.eq.s32.totalorder %s20, 3
      %p78 = por %p76, %p77
      %p80 = scmp.ne.s32.totalorder %s65, %s79
      %p81 = scmp.eq.s32.totalorder %s20, 0
      %p82 = por %p80, %p81
      %s83 = ssub.s32 %s21, %s33
      %s84 = ssub.s32 %s22, %s29
      %s85 = sor.u32 %s83, %s84
      %p86 = scmp.eq.s32.totalorder %s85, 0
      %s88 = sadd.s32 %s87, 1
      %s89 = scalar_select %p86, %s87, %s88
      %p92 = pneg %p86
      %p93 = scmp.eq.s32.totalorder %s14, 3
      %p94 = por %p92, %p93
      %p95 = scmp.ne.s32.totalorder %s87, %s90
      %p96 = scmp.eq.s32.totalorder %s14, 0
      %p97 = por %p95, %p96
      %p98 = scmp.ne.s32.totalorder %s87, %s90
      %p99 = scmp.eq.s32.totalorder %s19, 3
      %p100 = por %p98, %p99
      %p101 = scmp.ne.s32.totalorder %s90, %s91
      %p102 = scmp.eq.s32.totalorder %s19, 0
      %p103 = por %p101, %p102
      %p104 = scmp.ne.s32.totalorder %s90, %s91
      %p105 = scmp.eq.s32.totalorder %s20, 3
      %p106 = por %p104, %p105
      %p108 = scmp.ne.s32.totalorder %s91, %s107
      %p109 = scmp.eq.s32.totalorder %s20, 0
      %p110 = por %p108, %p109
      %p111 = scmp.le.s32.totalorder 1, %s14
      %p112 = scmp.lt.s32.totalorder %s14, 5
      %p113 = pnand %p111, %p112
      %p114 = pneg %p113
      // Predicated region
      $region9: #{tpu_custom_call.1} parent=5 // pred_check
        _
      $region10: #{tpu_custom_call.1} parent=5 // pred_check_branch
        %116 = sbr.rel (%p113) target = $region12
      $region11: #{tpu_custom_call.1} parent=5 // pred_region
        %s117 = ssub.s32 %s14, 1
        // Predicated region
        $region13: #{tpu_custom_call.1} parent=11 // pred_check
          %p118 = pneg %p75
        $region14: #{tpu_custom_call.1} parent=11 // pred_check_branch
          %120 = sbr.rel (%p118) target = $region16
        $region15: #{tpu_custom_call.1} parent=11 // pred_region
          _
        $region16: #{tpu_custom_call.1} parent=11 // pred_fallthru
          _
      $region12: #{tpu_custom_call.1} parent=5 // pred_fallthru
        _
      %p121 = scmp.lt.s32.totalorder %s14, 4
      // Predicated region
      $region17: #{tpu_custom_call.1} parent=5 // pred_check
        %p122 = pneg %p121
      $region18: #{tpu_custom_call.1} parent=5 // pred_check_branch
        %124 = sbr.rel (%p122) target = $region20
      $region19: #{tpu_custom_call.1} parent=5 // pred_region
        // Predicated region
        $region21: #{tpu_custom_call.1} parent=19 // pred_check
          %p125 = pneg %p48
        $region22: #{tpu_custom_call.1} parent=19 // pred_check_branch
          %127 = sbr.rel (%p125) target = $region24
        $region23: #{tpu_custom_call.1} parent=19 // pred_region
          %s128 = sand.u32 %s38, 1
          %s129 = scalar_lea.sflag [#allocation3], %s128
          %s130 = sand.u32 %s38, 1
          %s131 = smul.addr %s130, 4
          %s132 = scalar_lea.vmem [#allocation2], %s131
          %s134 = ssub.s32 64, 64
          %135 = vsyncadd %s129, %s134
          %s136 = smul.addr %s21, 2
          %s137 = sadd.s32 %s22, %s136
          %s138 = smul.addr %s137, 64
          %s139 = scalar_lea.hbm %s0, %s138
          %s141 = sshll.u32 %s132, 4
          %s142 = int_to_ptr.vmem [resolvable:$true] %s141
          %144 = dma.hbm_to_vmem [thread:$0]  %s139, 64, %s142, %s129
        $region24: #{tpu_custom_call.1} parent=19 // pred_fallthru
          _
      $region20: #{tpu_custom_call.1} parent=5 // pred_fallthru
        _
      %p145 = scmp.le.s32.totalorder 1, %s14
      %p146 = scmp.lt.s32.totalorder %s14, 5
      %p147 = pnand %p145, %p146
      %p148 = pneg %p147
      // Predicated region
      $region25: #{tpu_custom_call.1} parent=5 // pred_check
        _
      $region26: #{tpu_custom_call.1} parent=5 // pred_check_branch
        %150 = sbr.rel (%p147) target = $region28
      $region27: #{tpu_custom_call.1} parent=5 // pred_region
        %s151 = ssub.s32 %s14, 1
        %s152 = sand.u32 %s41, 1
        %s153 = scalar_lea.sflag [#allocation3], %s152
        %s154 = sand.u32 %s41, 1
        %s155 = smul.addr %s154, 4
        %s156 = scalar_lea.vmem [#allocation2], %s155
        // Predicated region
        $region29: #{tpu_custom_call.1} parent=27 // pred_check
          %p157 = pneg %p54
        $region30: #{tpu_custom_call.1} parent=27 // pred_check_branch
          %159 = sbr.rel (%p157) target = $region32
        $region31: #{tpu_custom_call.1} parent=27 // pred_region
          %160 = dma.done %s153, 64
        $region32: #{tpu_custom_call.1} parent=27 // pred_fallthru
          _
        %s161 = sand.u32 %s41, 1
        %s162 = scalar_lea.sflag [#allocation3], %s161
        %s163 = sand.u32 %s41, 1
        %s164 = smul.addr %s163, 4
        %s165 = scalar_lea.vmem [#allocation2], %s164
        %p166 = pneg %p54
        %p167 = pneg %p51
        %p168 = pneg %p75
        %p169 = pneg %p72
        %p170 = pneg %p103
        %p171 = pneg %p100
        %s172 = sand.u32 %s90, 1
        %s173 = scalar_lea.sflag [#allocation4], %s172
        %s174 = sand.u32 %s90, 1
        %s175 = smul.addr %s174, 4
        %s176 = scalar_lea.vmem [#allocation5], %s175
        %v177 = vld [vmem:[%s156] sm:$0xf]
        %vm178 = vcmask 1043456
        %v179 = vsel %vm178, %v177, 0.0
        %v180 = vrot.slane %v179, 4
        %v181 = vadd.f32 %v179, %v180
        %v182 = vrot.slane %v181, 2
        %v183 = vadd.f32 %v181, %v182
        %v184 = vrot.slane %v183, 1
        %v185 = vadd.f32 %v183, %v184
        %v186 = vmul.f32 %v185, 0.25
        %v187 = vsub.f32 %v177, %v186
        %v188 = vmul.f32 %v187, %v187
        %v189 = vsel %vm178, %v188, 0.0
        %v190 = vrot.slane %v189, 4
        %v191 = vadd.f32 %v189, %v190
        %v192 = vrot.slane %v191, 2
        %v193 = vadd.f32 %v191, %v192
        %v194 = vrot.slane %v193, 1
        %v195 = vadd.f32 %v193, %v194
        %v196 = vmul.f32 %v195, 0.25
        %v197 = vadd.f32 %v196, 1e-05
        %v198 = vrsqrt.pop %v197
        %v199 = vld [vmem:[%s1] sm:$0xf]
        %v200 = vmul.f32 %v177, %v198
        %202 = vset.pattern.permute.xlu0 0
        %203 = vperm.xlu0 %202, %v199
        %v204 = vpop.permute.xlu0 %203
        %v206 = vmul.f32 %v200, %v204
        %207 = vst [vmem:[%s176] sm:$0xf] %v206
        %s208 = sand.u32 %s90, 1
        %s209 = scalar_lea.sflag [#allocation4], %s208
        %s210 = sand.u32 %s90, 1
        %s211 = smul.addr %s210, 4
        %s212 = scalar_lea.vmem [#allocation5], %s211
        // Predicated region
        $region33: #{tpu_custom_call.1} parent=27 // pred_check
          %p213 = pneg %p100
        $region34: #{tpu_custom_call.1} parent=27 // pred_check_branch
          %215 = sbr.rel (%p213) target = $region36
        $region35: #{tpu_custom_call.1} parent=27 // pred_region
          %s217 = ssub.s32 64, 64
          %218 = vsyncadd %s209, %s217
          %s219 = smul.addr %s23, 2
          %s220 = sadd.s32 %s24, %s219
          %s221 = smul.addr %s220, 64
          %s222 = scalar_lea.hbm %s2, %s221
          %s224 = sshll.u32 %s212, 4
          %s225 = int_to_ptr.vmem [resolvable:$true] %s224
          %227 = dma.vmem_to_hbm [thread:$0]  %s225, 64, %s222, %s209
        $region36: #{tpu_custom_call.1} parent=27 // pred_fallthru
          _
      $region28: #{tpu_custom_call.1} parent=5 // pred_fallthru
        _
      %p228 = scmp.le.s32.totalorder 2, %s14
      // Predicated region
      $region37: #{tpu_custom_call.1} parent=5 // pred_check
        %p229 = pneg %p228
      $region38: #{tpu_custom_call.1} parent=5 // pred_check_branch
        %231 = sbr.rel (%p229) target = $region40
      $region39: #{tpu_custom_call.1} parent=5 // pred_region
        %s232 = ssub.s32 %s14, 2
        // Predicated region
        $region41: #{tpu_custom_call.1} parent=39 // pred_check
          %p233 = pneg %p106
        $region42: #{tpu_custom_call.1} parent=39 // pred_check_branch
          %235 = sbr.rel (%p233) target = $region44
        $region43: #{tpu_custom_call.1} parent=39 // pred_region
          %s236 = sand.u32 %s91, 1
          %s237 = scalar_lea.sflag [#allocation4], %s236
          %s238 = sand.u32 %s91, 1
          %s239 = smul.addr %s238, 4
          %s240 = scalar_lea.vmem [#allocation5], %s239
          %241 = dma.done %s237, 64
        $region44: #{tpu_custom_call.1} parent=39 // pred_fallthru
          _
      $region40: #{tpu_custom_call.1} parent=5 // pred_fallthru
        _
    $region6: #{tpu_custom_call.1} parent=1 // loop_footer
      %s18 = sadd.s32 1, %s14
    $region7: #{tpu_custom_call.1} parent=1 // loop_footer_branch
      %13 = sbr.rel target = $region3
    $region8: #{tpu_custom_call.1} parent=1 // loop_exit
      _
    %242 = vsyncpa [#allocation3], 1
    %s243 = scalar_lea.sflag [#allocation3], 1
    %244 = vsyncpa %s243, 1
    %245 = vsyncpa [#allocation4], 1
    %s246 = scalar_lea.sflag [#allocation4], 1
    %247 = vsyncpa %s246, 1

</llo_original>
